<compile_context>
chip_gen: v6e
topology: v6e:2x2x1
jax: 0.10.0
libtpu: 0.0.40
codegen_flags: <defaults>
</compile_context>

<pallas_src>
import jax
import jax.numpy as jnp
from jax.experimental import pallas as pl
from jax.experimental.pallas import tpu as pltpu


def _round_up(n, m):
    return ((n + m - 1) // m) * m


def bin_model_kernel(xT_ref, w1_ref, b1_ref, w2_ref, b2_ref, o_ref):
    """One batch tile, batch on the lane axis.

    Shapes per block:
      xT: (20, TN)   w1: (60, 20)   b1: (60, 1)
      w2: (1, 60)    b2: (1, 1) in SMEM        o: (1, TN)
    """
    x = xT_ref[...]                                              # (20, TN)
    # Hidden layer: (60, 20) @ (20, TN) on the MXU, f32 accumulate.
    h = jnp.dot(w1_ref[...], x, preferred_element_type=jnp.float32)  # (60, TN)
    h = h + b1_ref[...]                       # broadcast (60, 1) over lanes
    h = jnp.maximum(h, 0.0)                   # ReLU, full lane occupancy
    # Output layer: (1, 60) @ (60, TN) -> (1, TN), lane-dense result.
    z = jnp.dot(w2_ref[...], h, preferred_element_type=jnp.float32)
    z = z + b2_ref[0, 0]                      # scalar bias from SMEM
    o_ref[...] = jax.nn.sigmoid(z).astype(o_ref.dtype)


def bin_model_forward(x, w1, b1, w2, b2, *, tn=8192):
    """Pallas wrapper.

    x:  (B, 20) float32
    w1: (60, 20), b1: (60,)   -- PyTorch nn.Linear layout (out, in)
    w2: (1, 60),  b2: (1,)
    returns (B, 1) float32.
    """
    B, F = x.shape          # F = 20
    H = w1.shape[0]         # H = 60

    # Lane tile: multiple of 128, no larger than the (padded) batch.
    b128 = _round_up(B, 128)
    tn = min(_round_up(tn, 128), b128)
    Bp = _round_up(B, tn)
    grid = (Bp // tn,)

    # Batch on lanes: transpose + pad in the wrapper (cheap XLA ops).
    xT = jnp.pad(x.T, ((0, 0), (0, Bp - B)))            # (20, Bp)
    b1c = b1.reshape(H, 1).astype(jnp.float32)          # (60, 1) column
    b2s = jnp.asarray(b2, jnp.float32).reshape(1, 1)    # scalar -> SMEM

    # NOTE: if profiling shows exposed DMA, the xT spec can take
    # pipeline_mode=pl.Buffered(3).  bf16 inputs would halve HBM traffic
    # (kernel is bandwidth-bound); kept f32 here for exact parity.
    out = pl.pallas_call(
        bin_model_kernel,
        out_shape=jax.ShapeDtypeStruct((1, Bp), jnp.float32),
        grid=grid,
        in_specs=[
            pl.BlockSpec((F, tn), lambda i: (0, i)),     # streamed x tiles
            pl.BlockSpec((H, F), lambda i: (0, 0)),      # resident weights
            pl.BlockSpec((H, 1), lambda i: (0, 0)),
            pl.BlockSpec((1, H), lambda i: (0, 0)),
            pl.BlockSpec(memory_space=pltpu.MemorySpace.SMEM),  # b2 scalar
        ],
        out_specs=pl.BlockSpec((1, tn), lambda i: (0, i)),
        compiler_params=pltpu.CompilerParams(
            dimension_semantics=("parallel",),   # batch tiles independent
        ),
    )(xT, w1, b1c, w2, b2s)

    return out[0, :B].reshape(B, 1)


def init_params(key):
    """Deterministic synthetic init with PyTorch nn.Linear shapes/ranges."""
    k1, k2, k3, k4 = jax.random.split(key, 4)
    lim1 = 1.0 / jnp.sqrt(20.0)
    lim2 = 1.0 / jnp.sqrt(60.0)
    w1 = jax.random.uniform(k1, (60, 20), jnp.float32, -lim1, lim1)
    b1 = jax.random.uniform(k2, (60,), jnp.float32, -lim1, lim1)
    w2 = jax.random.uniform(k3, (1, 60), jnp.float32, -lim2, lim2)
    b2 = jax.random.uniform(k4, (1,), jnp.float32, -lim2, lim2)
    return w1, b1, w2, b2


def reference_forward(x, w1, b1, w2, b2):
    """Plain-JAX reference (PyTorch layout: y = x @ W.T + b)."""
    h = jnp.maximum(x @ w1.T + b1, 0.0)
    return jax.nn.sigmoid(h @ w2.T + b2)


if __name__ == "__main__":
    key = jax.random.PRNGKey(0)
    kx, kp = jax.random.split(key)

    # Small but multi-tile test: B=1000 with tn=256 -> padded to 1024, grid=(4,)
    # exercises batch tiling, pipelining, and the padding/slice path.
    B = 1000
    x = jax.random.normal(kx, (B, 20), jnp.float32)
    w1, b1, w2, b2 = init_params(kp)

    out = bin_model_forward(x, w1, b1, w2, b2, tn=256)
    out = jax.block_until_ready(out)

    ref = reference_forward(x, w1, b1, w2, b2)
    assert out.shape == (B, 1), out.shape
    assert jnp.allclose(out, ref, atol=2e-5, rtol=1e-4), (
        float(jnp.max(jnp.abs(out - ref)))
    )

    print("KERNEL_OK")
</pallas_src>

<mosaic_0001>
module attributes {stable_mosaic.version = 11 : i64} {
  func.func @bin_model_kernel(%arg0: i32, %arg1: memref<20x256xf32, #tpu.memory_space<vmem>>, %arg2: memref<60x20xf32, #tpu.memory_space<vmem>>, %arg3: memref<60x1xf32, #tpu.memory_space<vmem>>, %arg4: memref<1x60xf32, #tpu.memory_space<vmem>>, %arg5: memref<1x1xf32, #tpu.memory_space<smem>>, %arg6: memref<1x256xf32, #tpu.memory_space<vmem>>) attributes {dimension_semantics = [#tpu.dimension_semantics<parallel>], iteration_bounds = array<i64: 4>, scalar_prefetch = 0 : i64, scratch_operands = 0 : i64, tpu.core_type = #tpu.core_type<tc>, window_params = [{transform_indices = @transform_0, window_bounds = array<i64: 20, 256>}, {pipeline_mode = #tpu.pipeline_mode<synchronous>, transform_indices = @transform_1, window_bounds = array<i64: 60, 20>}, {pipeline_mode = #tpu.pipeline_mode<synchronous>, transform_indices = @transform_2, window_bounds = array<i64: 60, 1>}, {pipeline_mode = #tpu.pipeline_mode<synchronous>, transform_indices = @transform_3, window_bounds = array<i64: 1, 60>}, {transform_indices = @transform_4, window_bounds = array<i64: 1, 1>}, {transform_indices = @transform_5, window_bounds = array<i64: 1, 256>}]} {
    %c0 = arith.constant 0 : index
    %c0_0 = arith.constant 0 : index
    %0 = vector.load %arg1[%c0, %c0_0] : memref<20x256xf32, #tpu.memory_space<vmem>>, vector<20x256xf32>
    %c0_1 = arith.constant 0 : index
    %c0_2 = arith.constant 0 : index
    %1 = vector.load %arg2[%c0_1, %c0_2] : memref<60x20xf32, #tpu.memory_space<vmem>>, vector<60x20xf32>
    %cst = arith.constant dense<0.000000e+00> : vector<60x256xf32>
    %2 = tpu.matmul %1, %0, %cst {dimension_numbers = #tpu.dot_dimension_numbers<[1], [0], [0], [1], [0, 0, 1, 1], [], []>} : vector<60x20xf32>, vector<20x256xf32>, vector<60x256xf32> -> vector<60x256xf32>
    %c0_3 = arith.constant 0 : index
    %c0_4 = arith.constant 0 : index
    %3 = vector.load %arg3[%c0_3, %c0_4] : memref<60x1xf32, #tpu.memory_space<vmem>>, vector<60x1xf32>
    %4 = vector.broadcast %3 : vector<60x1xf32> to vector<60x256xf32>
    %5 = arith.addf %2, %4 : vector<60x256xf32>
    %cst_5 = arith.constant 0.000000e+00 : f32
    %6 = vector.broadcast %cst_5 : f32 to vector<60x256xf32>
    %7 = arith.maximumf %5, %6 : vector<60x256xf32>
    %c0_6 = arith.constant 0 : index
    %c0_7 = arith.constant 0 : index
    %8 = vector.load %arg4[%c0_6, %c0_7] : memref<1x60xf32, #tpu.memory_space<vmem>>, vector<1x60xf32>
    %cst_8 = arith.constant dense<0.000000e+00> : vector<1x256xf32>
    %9 = tpu.matmul %8, %7, %cst_8 {dimension_numbers = #tpu.dot_dimension_numbers<[1], [0], [0], [1], [0, 0, 1, 1], [], []>} : vector<1x60xf32>, vector<60x256xf32>, vector<1x256xf32> -> vector<1x256xf32>
    %c0_9 = arith.constant 0 : index
    %c0_10 = arith.constant 0 : index
    %10 = memref.load %arg5[%c0_9, %c0_10] : memref<1x1xf32, #tpu.memory_space<smem>>
    %11 = vector.broadcast %10 : f32 to vector<1x256xf32>
    %12 = arith.addf %9, %11 : vector<1x256xf32>
    %13 = arith.negf %12 : vector<1x256xf32>
    %14 = math.exp %13 : vector<1x256xf32>
    %cst_11 = arith.constant 1.000000e+00 : f32
    %15 = vector.broadcast %cst_11 : f32 to vector<1x256xf32>
    %16 = arith.addf %15, %14 : vector<1x256xf32>
    %17 = arith.divf %15, %16 : vector<1x256xf32>
    %c0_12 = arith.constant 0 : index
    %c0_13 = arith.constant 0 : index
    %18 = vector.load %arg6[%c0_12, %c0_13] : memref<1x256xf32, #tpu.memory_space<vmem>>, vector<1x256xf32>
    tpu.vector_store %arg6[%c0_12, %c0_13], %17 {strides = array<i32>} : memref<1x256xf32, #tpu.memory_space<vmem>>, vector<1x256xf32>,
    return
  }
  func.func @transform_0(%arg0: i32) -> (i32, i32) {
    %c0_i32 = arith.constant 0 : i32
    %c0_i32_0 = arith.constant 0 : i32
    return %c0_i32, %arg0 : i32, i32
  }
  func.func @transform_1(%arg0: i32) -> (i32, i32) {
    %c0_i32 = arith.constant 0 : i32
    %c0_i32_0 = arith.constant 0 : i32
    %c0_i32_1 = arith.constant 0 : i32
    return %c0_i32, %c0_i32_0 : i32, i32
  }
  func.func @transform_2(%arg0: i32) -> (i32, i32) {
    %c0_i32 = arith.constant 0 : i32
    %c0_i32_0 = arith.constant 0 : i32
    %c0_i32_1 = arith.constant 0 : i32
    return %c0_i32, %c0_i32_0 : i32, i32
  }
  func.func @transform_3(%arg0: i32) -> (i32, i32) {
    %c0_i32 = arith.constant 0 : i32
    %c0_i32_0 = arith.constant 0 : i32
    %c0_i32_1 = arith.constant 0 : i32
    return %c0_i32, %c0_i32_0 : i32, i32
  }
  func.func @transform_4(%arg0: i32) -> (i32, i32) {
    %c0_i32 = arith.constant 0 : i32
    %c0_i32_0 = arith.constant 0 : i32
    %c0_i32_1 = arith.constant 0 : i32
    return %c0_i32, %c0_i32_0 : i32, i32
  }
  func.func @transform_5(%arg0: i32) -> (i32, i32) {
    %c0_i32 = arith.constant 0 : i32
    %c0_i32_0 = arith.constant 0 : i32
    return %c0_i32, %arg0 : i32, i32
  }
}

</mosaic_0001>

<llo_original>
// kernel: tpu_custom_call.1
$region0: #{tpu_custom_call.1}
  #allocation0 [shape = 'u32[]', space=smem, size = 0x4, offset = 0x4, fixed_abs, tag = 'smem constant byte address 0x4 - core index']
  #allocation1 [shape = 'u32[144,128]{1,0:T(1,128)}', space=vmem, size = 0x12000, scoped, tag = 'internal scratch']
  #allocation2 [shape = 'f32[1,1]{1,0:T(1,128)S(6)}', space=smem, size = 0x200, scoped, tag = 'scoped memory for tpu_custom_call.1']
  %s0 = inlined_call_operand.hbm [shape: f32[20,1024], index: 0, kind: input, shape index: {}]
  %s1 = inlined_call_operand.vmem [shape: f32[60,20], index: 1, kind: input, shape index: {}]
  %s2 = inlined_call_operand.vmem [shape: f32[60,1], index: 2, kind: input, shape index: {}]
  %s3 = inlined_call_operand.vmem [shape: f32[1,60], index: 3, kind: input, shape index: {}]
  %s4 = inlined_call_operand.<no memory space> [shape: f32[1,1], index: 4, kind: input, shape index: {}]
  %s5 = inlined_call_operand.hbm [shape: f32[1,1024], index: 5, kind: output, shape index: {}]
  %s6 = sld [smem:[#allocation0]]
  $region57: #{tpu_custom_call.1} parent=0
    _
  %s8 = ssub.s32 1, %s6
  %s9 = scalar_select 0, %s8, %s6
  %10 = sst [smem:[#allocation2]] %s4
  $region1: #{tpu_custom_call.1} parent=0
    #allocation3 [shape = 'u8[49152]{0}', space=vmem, size = 0xc000, scoped, tag = 'input window, operand 0']
    #allocation4 [shape = 's32[2]{0}', space=sflag, size = 0x8, scoped, tag = 'scoped memory for tpu_custom_call.1']
    #allocation5 [shape = 's32[2]{0}', space=sflag, size = 0x8, scoped, tag = 'scoped memory for tpu_custom_call.1']
    #allocation6 [shape = 'u8[2048]{0}', space=vmem, size = 0x800, scoped, tag = 'output window, operand 0']
    %11 = vsyncpa [#allocation4], 0
    %s12 = scalar_lea.sflag [#allocation4], 1
    %13 = vsyncpa %s12, 0
    %14 = vsyncpa [#allocation5], 0
    %s15 = scalar_lea.sflag [#allocation5], 1
    %16 = vsyncpa %s15, 0
    loop: start=0, step=1, limit=6
    $region2: #{tpu_custom_call.1} parent=1 // loop_pre_header
      _
    $region3: #{tpu_custom_call.1} parent=1 // loop_header
      %s18 = sphi 0, %s22
      %p19 = scmp.ge.s32.totalorder %s18, 6
      %s28 = sphi 0, %s30
      %s31 = sphi 0, %s28
      %s32 = sphi 0, %s31
      %s48 = sphi 0, %s32
      %s52 = sphi 0, %s52
      %s54 = sphi 0, %s52
      %s55 = sphi 0, %s54
      %s69 = sphi 0, %s55
      %s73 = sphi 0, %s73
      %s75 = sphi 0, %s73
      %s76 = sphi 0, %s75
      %s90 = sphi 0, %s76
      %s94 = sphi 0, %s94
      %s96 = sphi 0, %s94
      %s97 = sphi 0, %s96
      %s111 = sphi 0, %s97
      %s115 = sphi 0, %s115
      %s117 = sphi 0, %s115
      %s118 = sphi 0, %s117
      %s132 = sphi 0, %s118
      %s138 = sphi 0, %s140
      %s141 = sphi 0, %s138
      %s142 = sphi 0, %s141
      %s158 = sphi 0, %s142
    $region4: #{tpu_custom_call.1} parent=1 // loop_header_branch
      %21 = sbr.rel (%p19) target = $region8
    $region5: #{tpu_custom_call.1} parent=1 // loop_body
      %s23 = ssub.s32 %s18, 1
      %s24 = ssub.s32 %s18, 2
      %s25 = sadd.s32 %s18, 1
      %s26 = ssub.s32 %s18, %s25
      %p27 = scmp.eq.s32.totalorder %s26, 0
      %s29 = sadd.s32 %s28, 1
      %s30 = scalar_select %p27, %s28, %s29
      %p33 = pneg %p27
      %p34 = scmp.eq.s32.totalorder %s18, 3
      %p35 = por %p33, %p34
      %p36 = scmp.ne.s32.totalorder %s28, %s31
      %p37 = scmp.eq.s32.totalorder %s18, 0
      %p38 = por %p36, %p37
      %p39 = scmp.ne.s32.totalorder %s28, %s31
      %p40 = scmp.eq.s32.totalorder %s23, 3
      %p41 = por %p39, %p40
      %p42 = scmp.ne.s32.totalorder %s31, %s32
      %p43 = scmp.eq.s32.totalorder %s23, 0
      %p44 = por %p42, %p43
      %p45 = scmp.ne.s32.totalorder %s31, %s32
      %p46 = scmp.eq.s32.totalorder %s24, 3
      %p47 = por %p45, %p46
      %p49 = scmp.ne.s32.totalorder %s32, %s48
      %p50 = scmp.eq.s32.totalorder %s24, 0
      %p51 = por %p49, %p50
      %s53 = sadd.s32 %s52, 1
      %p56 = scmp.eq.s32.totalorder %s18, 3
      %p57 = scmp.ne.s32.totalorder %s52, %s54
      %p58 = scmp.eq.s32.totalorder %s18, 0
      %p59 = por %p57, %p58
      %p60 = scmp.ne.s32.totalorder %s52, %s54
      %p61 = scmp.eq.s32.totalorder %s23, 3
      %p62 = por %p60, %p61
      %p63 = scmp.ne.s32.totalorder %s54, %s55
      %p64 = scmp.eq.s32.totalorder %s23, 0
      %p65 = por %p63, %p64
      %p66 = scmp.ne.s32.totalorder %s54, %s55
      %p67 = scmp.eq.s32.totalorder %s24, 3
      %p68 = por %p66, %p67
      %p70 = scmp.ne.s32.totalorder %s55, %s69
      %p71 = scmp.eq.s32.totalorder %s24, 0
      %p72 = por %p70, %p71
      %s74 = sadd.s32 %s73, 1
      %p77 = scmp.eq.s32.totalorder %s18, 3
      %p78 = scmp.ne.s32.totalorder %s73, %s75
      %p79 = scmp.eq.s32.totalorder %s18, 0
      %p80 = por %p78, %p79
      %p81 = scmp.ne.s32.totalorder %s73, %s75
      %p82 = scmp.eq.s32.totalorder %s23, 3
      %p83 = por %p81, %p82
      %p84 = scmp.ne.s32.totalorder %s75, %s76
      %p85 = scmp.eq.s32.totalorder %s23, 0
      %p86 = por %p84, %p85
      %p87 = scmp.ne.s32.totalorder %s75, %s76
      %p88 = scmp.eq.s32.totalorder %s24, 3
      %p89 = por %p87, %p88
      %p91 = scmp.ne.s32.totalorder %s76, %s90
      %p92 = scmp.eq.s32.totalorder %s24, 0
      %p93 = por %p91, %p92
      %s95 = sadd.s32 %s94, 1
      %p98 = scmp.eq.s32.totalorder %s18, 3
      %p99 = scmp.ne.s32.totalorder %s94, %s96
      %p100 = scmp.eq.s32.totalorder %s18, 0
      %p101 = por %p99, %p100
      %p102 = scmp.ne.s32.totalorder %s94, %s96
      %p103 = scmp.eq.s32.totalorder %s23, 3
      %p104 = por %p102, %p103
      %p105 = scmp.ne.s32.totalorder %s96, %s97
      %p106 = scmp.eq.s32.totalorder %s23, 0
      %p107 = por %p105, %p106
      %p108 = scmp.ne.s32.totalorder %s96, %s97
      %p109 = scmp.eq.s32.totalorder %s24, 3
      %p110 = por %p108, %p109
      %p112 = scmp.ne.s32.totalorder %s97, %s111
      %p113 = scmp.eq.s32.totalorder %s24, 0
      %p114 = por %p112, %p113
      %s116 = sadd.s32 %s115, 1
      %p119 = scmp.eq.s32.totalorder %s18, 3
      %p120 = scmp.ne.s32.totalorder %s115, %s117
      %p121 = scmp.eq.s32.totalorder %s18, 0
      %p122 = por %p120, %p121
      %p123 = scmp.ne.s32.totalorder %s115, %s117
      %p124 = scmp.eq.s32.totalorder %s23, 3
      %p125 = por %p123, %p124
      %p126 = scmp.ne.s32.totalorder %s117, %s118
      %p127 = scmp.eq.s32.totalorder %s23, 0
      %p128 = por %p126, %p127
      %p129 = scmp.ne.s32.totalorder %s117, %s118
      %p130 = scmp.eq.s32.totalorder %s24, 3
      %p131 = por %p129, %p130
      %p133 = scmp.ne.s32.totalorder %s118, %s132
      %p134 = scmp.eq.s32.totalorder %s24, 0
      %p135 = por %p133, %p134
      %s136 = ssub.s32 %s18, %s25
      %p137 = scmp.eq.s32.totalorder %s136, 0
      %s139 = sadd.s32 %s138, 1
      %s140 = scalar_select %p137, %s138, %s139
      %p143 = pneg %p137
      %p144 = scmp.eq.s32.totalorder %s18, 3
      %p145 = por %p143, %p144
      %p146 = scmp.ne.s32.totalorder %s138, %s141
      %p147 = scmp.eq.s32.totalorder %s18, 0
      %p148 = por %p146, %p147
      %p149 = scmp.ne.s32.totalorder %s138, %s141
      %p150 = scmp.eq.s32.totalorder %s23, 3
      %p151 = por %p149, %p150
      %p152 = scmp.ne.s32.totalorder %s141, %s142
      %p153 = scmp.eq.s32.totalorder %s23, 0
      %p154 = por %p152, %p153
      %p155 = scmp.ne.s32.totalorder %s141, %s142
      %p156 = scmp.eq.s32.totalorder %s24, 3
      %p157 = por %p155, %p156
      %p159 = scmp.ne.s32.totalorder %s142, %s158
      %p160 = scmp.eq.s32.totalorder %s24, 0
      %p161 = por %p159, %p160
      %p162 = scmp.le.s32.totalorder 1, %s18
      %p163 = scmp.lt.s32.totalorder %s18, 5
      %p164 = pnand %p162, %p163
      %p165 = pneg %p164
      // Predicated region
      $region9: #{tpu_custom_call.1} parent=5 // pred_check
        _
      $region10: #{tpu_custom_call.1} parent=5 // pred_check_branch
        %167 = sbr.rel (%p164) target = $region12
      $region11: #{tpu_custom_call.1} parent=5 // pred_region
        %s168 = ssub.s32 %s18, 1
        // Predicated region
        $region13: #{tpu_custom_call.1} parent=11 // pred_check
          %p169 = pneg %p65
        $region14: #{tpu_custom_call.1} parent=11 // pred_check_branch
          %171 = sbr.rel (%p169) target = $region16
        $region15: #{tpu_custom_call.1} parent=11 // pred_region
          _
        $region16: #{tpu_custom_call.1} parent=11 // pred_fallthru
          _
        // Predicated region
        $region17: #{tpu_custom_call.1} parent=11 // pred_check
          %p172 = pneg %p86
        $region18: #{tpu_custom_call.1} parent=11 // pred_check_branch
          %174 = sbr.rel (%p172) target = $region20
        $region19: #{tpu_custom_call.1} parent=11 // pred_region
          _
        $region20: #{tpu_custom_call.1} parent=11 // pred_fallthru
          _
        // Predicated region
        $region21: #{tpu_custom_call.1} parent=11 // pred_check
          %p175 = pneg %p107
        $region22: #{tpu_custom_call.1} parent=11 // pred_check_branch
          %177 = sbr.rel (%p175) target = $region24
        $region23: #{tpu_custom_call.1} parent=11 // pred_region
          _
        $region24: #{tpu_custom_call.1} parent=11 // pred_fallthru
          _
        // Predicated region
        $region25: #{tpu_custom_call.1} parent=11 // pred_check
          %p178 = pneg %p128
        $region26: #{tpu_custom_call.1} parent=11 // pred_check_branch
          %180 = sbr.rel (%p178) target = $region28
        $region27: #{tpu_custom_call.1} parent=11 // pred_region
          _
        $region28: #{tpu_custom_call.1} parent=11 // pred_fallthru
          _
      $region12: #{tpu_custom_call.1} parent=5 // pred_fallthru
        _
      %p181 = scmp.lt.s32.totalorder %s18, 4
      // Predicated region
      $region29: #{tpu_custom_call.1} parent=5 // pred_check
        %p182 = pneg %p181
      $region30: #{tpu_custom_call.1} parent=5 // pred_check_branch
        %184 = sbr.rel (%p182) target = $region32
      $region31: #{tpu_custom_call.1} parent=5 // pred_region
        // Predicated region
        $region33: #{tpu_custom_call.1} parent=31 // pred_check
          %p185 = pneg %p38
        $region34: #{tpu_custom_call.1} parent=31 // pred_check_branch
          %187 = sbr.rel (%p185) target = $region36
        $region35: #{tpu_custom_call.1} parent=31 // pred_region
          %s188 = sand.u32 %s28, 1
          %s189 = scalar_lea.sflag [#allocation4], %s188
          %s190 = sand.u32 %s28, 1
          %s191 = smul.addr %s190, 48
          %s192 = scalar_lea.vmem [#allocation3], %s191
          %s193 = smul.u32 2, %s18
          %s195 = ssub.s32 768, 768
          %196 = vsyncadd %s189, %s195
          %s197 = smul.addr %s193, 128
          %s198 = scalar_lea.hbm %s0, %s197
          %s199 = sshll.u32 %s192, 4
          %s200 = int_to_ptr.vmem [resolvable:$true] %s199
          %205 = dma.hbm_to_vmem [thread:$0]  %s198, 768, %s200, %s189, 1024, 256, 16
        $region36: #{tpu_custom_call.1} parent=31 // pred_fallthru
          _
      $region32: #{tpu_custom_call.1} parent=5 // pred_fallthru
        _
      %p206 = scmp.le.s32.totalorder 1, %s18
      %p207 = scmp.lt.s32.totalorder %s18, 5
      %p208 = pnand %p206, %p207
      %p209 = pneg %p208
      // Predicated region
      $region37: #{tpu_custom_call.1} parent=5 // pred_check
        _
      $region38: #{tpu_custom_call.1} parent=5 // pred_check_branch
        %211 = sbr.rel (%p208) target = $region40
      $region39: #{tpu_custom_call.1} parent=5 // pred_region
        %s212 = ssub.s32 %s18, 1
        %s213 = sand.u32 %s31, 1
        %s214 = scalar_lea.sflag [#allocation4], %s213
        %s215 = sand.u32 %s31, 1
        %s216 = smul.addr %s215, 48
        %s217 = scalar_lea.vmem [#allocation3], %s216
        // Predicated region
        $region41: #{tpu_custom_call.1} parent=39 // pred_check
          %p218 = pneg %p44
        $region42: #{tpu_custom_call.1} parent=39 // pred_check_branch
          %220 = sbr.rel (%p218) target = $region44
        $region43: #{tpu_custom_call.1} parent=39 // pred_region
          %221 = dma.done %s214, 768
        $region44: #{tpu_custom_call.1} parent=39 // pred_fallthru
          _
        %s222 = sand.u32 %s31, 1
        %s223 = scalar_lea.sflag [#allocation4], %s222
        %s224 = sand.u32 %s31, 1
        %s225 = smul.addr %s224, 48
        %s226 = scalar_lea.vmem [#allocation3], %s225
        %p227 = pneg %p44
        %p228 = pneg %p41
        %p229 = pneg %p65
        %p230 = pneg %p62
        %p231 = pneg %p86
        %p232 = pneg %p83
        %p233 = pneg %p107
        %p234 = pneg %p104
        %p235 = pneg %p128
        %p236 = pneg %p125
        %p237 = pneg %p154
        %p238 = pneg %p151
        %s239 = sand.u32 %s141, 1
        %s240 = scalar_lea.sflag [#allocation5], %s239
        %s241 = sand.u32 %s141, 1
        %s242 = smul.addr %s241, 2
        %s243 = scalar_lea.vmem [#allocation6], %s242
        %s244 = smul.u32 2, %s23
        %s245 = smul.u32 2, %s23
        %v246 = vld [vmem:[%s217] sm:$0xff]
        %v247 = vld [vmem:[%s217 + $0x8] sm:$0xff]
        %v248 = vld [vmem:[%s217 + $0x10] sm:$0xff]
        %v249 = vld [vmem:[%s217 + $0x18] sm:$0xff]
        %v250 = vld [vmem:[%s217 + $0x20] sm:$0xf]
        %v251 = vld [vmem:[%s217 + $0x28] sm:$0xf]
        %v252 = vld [vmem:[%s1] sm:$0xff]
        %v253 = vld [vmem:[%s1 + $0x8] sm:$0xff]
        %v254 = vld [vmem:[%s1 + $0x10] sm:$0xff]
        %v255 = vld [vmem:[%s1 + $0x18] sm:$0xff]
        %v256 = vld [vmem:[%s1 + $0x20] sm:$0xff]
        %v257 = vld [vmem:[%s1 + $0x28] sm:$0xff]
        %v258 = vld [vmem:[%s1 + $0x30] sm:$0xff]
        %v259 = vld [vmem:[%s1 + $0x38] sm:$0xf]
        %v260 = vld [vmem:[%s2] sm:$0xff]
        %v261 = vld [vmem:[%s2 + $0x8] sm:$0xff]
        %v262 = vld [vmem:[%s2 + $0x10] sm:$0xff]
        %v263 = vld [vmem:[%s2 + $0x18] sm:$0xff]
        %v264 = vld [vmem:[%s2 + $0x20] sm:$0xff]
        %v265 = vld [vmem:[%s2 + $0x28] sm:$0xff]
        %v266 = vld [vmem:[%s2 + $0x30] sm:$0xff]
        %v267 = vld [vmem:[%s2 + $0x38] sm:$0xf]
        %269 = vset.pattern.permute.xlu0 0
        %270 = vperm.xlu0 %269, %v260
        %v271 = vpop.permute.xlu0 %270
        %274 = vset.pattern.permute.xlu0 0
        %275 = vperm.xlu0 %274, %v261
        %v276 = vpop.permute.xlu0 %275
        %279 = vset.pattern.permute.xlu0 0
        %280 = vperm.xlu0 %279, %v262
        %v281 = vpop.permute.xlu0 %280
        %284 = vset.pattern.permute.xlu0 0
        %285 = vperm.xlu0 %284, %v263
        %v286 = vpop.permute.xlu0 %285
        %289 = vset.pattern.permute.xlu0 0
        %290 = vperm.xlu0 %289, %v264
        %v291 = vpop.permute.xlu0 %290
        %294 = vset.pattern.permute.xlu0 0
        %295 = vperm.xlu0 %294, %v265
        %v296 = vpop.permute.xlu0 %295
        %299 = vset.pattern.permute.xlu0 0
        %300 = vperm.xlu0 %299, %v266
        %v301 = vpop.permute.xlu0 %300
        %304 = vset.pattern.permute.xlu0 0
        %305 = vperm.xlu0 %304, %v267
        %v306 = vpop.permute.xlu0 %305
        %vm308 = vcmask 162816
        %v310 = vsel %vm308, %v252, 0
        %v313 = vsel %vm308, %v253, 0
        %v316 = vsel %vm308, %v254, 0
        %v319 = vsel %vm308, %v255, 0
        %v322 = vsel %vm308, %v256, 0
        %v325 = vsel %vm308, %v257, 0
        %v328 = vsel %vm308, %v258, 0
        %v331 = vsel %vm308, %v259, 0
        %vm333 = vcmask 1043456
        %v335 = vsel %vm333, %v250, 0
        %v338 = vsel %vm333, %v251, 0
        %340 = vmatprep.subr.mxu0 0.0
        %341 = vmatpush1.msra.mxu0 0.0
        %342 = vmatprep.subr.mxu0 0.0
        %343 = vmatpush1.msra.mxu0 0.0
        %344 = vmatprep.subr.mxu0 0.0
        %345 = vmatpush1.msra.mxu0 0.0
        %346 = vmatprep.subr.mxu0 0.0
        %347 = vmatpush1.msra.mxu0 0.0
        %348 = vmatprep.subr.mxu0 0.0
        %349 = vmatpush1.msra.mxu0 0.0
        %350 = vmatprep.subr.mxu0 0.0
        %351 = vmatpush1.msra.mxu0 0.0
        %352 = vmatprep.subr.mxu0 0.0
        %353 = vmatpush1.msra.mxu0 0.0
        %354 = vmatprep.subr.mxu0 0.0
        %355 = vmatpush1.msra.mxu0 0.0
        %356 = vmatprep.subr.mxu0 0.0
        %357 = vmatpush1.msra.mxu0 0.0
        %358 = vmatprep.subr.mxu0 0.0
        %359 = vmatpush1.msra.mxu0 0.0
        %360 = vmatprep.subr.mxu0 0.0
        %361 = vmatpush1.msra.mxu0 0.0
        %362 = vmatprep.subr.mxu0 0.0
        %363 = vmatpush1.msra.mxu0 0.0
        %364 = vmatprep.subr.mxu0 0.0
        %365 = vmatpush1.msra.mxu0 0.0
        %366 = vmatprep.subr.mxu0 %v338
        %367 = vmatpush1.msra.mxu0 %v335
        %368 = vmatprep.subr.mxu0 %v249
        %369 = vmatpush1.msra.mxu0 %v248
        %370 = vmatprep.subr.mxu0 %v247
        %371 = vmatpush1.msra.mxu0 %v246
        %372 = vmatprep.subr.mxu0 0.0
        %373 = vmatpush2.msra.mxu0 0.0
        %374 = vmatprep.subr.mxu0 0.0
        %375 = vmatpush2.msra.mxu0 0.0
        %376 = vmatprep.subr.mxu0 0.0
        %377 = vmatpush2.msra.mxu0 0.0
        %378 = vmatprep.subr.mxu0 0.0
        %379 = vmatpush2.msra.mxu0 0.0
        %380 = vmatprep.subr.mxu0 0.0
        %381 = vmatpush2.msra.mxu0 0.0
        %382 = vmatprep.subr.mxu0 0.0
        %383 = vmatpush2.msra.mxu0 0.0
        %384 = vmatprep.subr.mxu0 0.0
        %385 = vmatpush2.msra.mxu0 0.0
        %386 = vmatprep.subr.mxu0 0.0
        %387 = vmatpush2.msra.mxu0 0.0
        %388 = vmatprep.subr.mxu0 0.0
        %389 = vmatpush2.msra.mxu0 0.0
        %390 = vmatprep.subr.mxu0 0.0
        %391 = vmatpush2.msra.mxu0 0.0
        %392 = vmatprep.subr.mxu0 0.0
        %393 = vmatpush2.msra.mxu0 0.0
        %394 = vmatprep.subr.mxu0 0.0
        %395 = vmatpush2.msra.mxu0 0.0
        %396 = vmatprep.subr.mxu0 0.0
        %397 = vmatpush2.msra.mxu0 0.0
        %398 = vmatprep.subr.mxu0 0.0
        %399 = vmatpush2.msra.mxu0 0.0
        %400 = vmatprep.subr.mxu0 0.0
        %401 = vmatpush2.msra.mxu0 0.0
        %402 = vmatprep.subr.mxu0 0.0
        %403 = vmatpush2.msra.mxu0 0.0
        %404 = vmatprep.mubr.f32.mxu0 0.0
        %405 = vmatmul.mubr.f32.gmra.mxu0 %v310
        %v406 = vpop.f32.mrf.mxu0
        %v407 = vadd.f32 %v271, %v406
        %v408 = vpop.f32.mrf.mxu0
        %v409 = vadd.f32 %v271, %v408
        %410 = vmatprep.mubr.f32.mxu0 0.0
        %411 = vmatmul.mubr.f32.gmra.mxu0 %v313
        %v412 = vpop.f32.mrf.mxu0
        %v413 = vadd.f32 %v276, %v412
        %v414 = vpop.f32.mrf.mxu0
        %v415 = vadd.f32 %v276, %v414
        %416 = vmatprep.mubr.f32.mxu0 0.0
        %417 = vmatmul.mubr.f32.gmra.mxu0 %v316
        %v418 = vpop.f32.mrf.mxu0
        %v419 = vadd.f32 %v281, %v418
        %v420 = vpop.f32.mrf.mxu0
        %v421 = vadd.f32 %v281, %v420
        %422 = vmatprep.mubr.f32.mxu0 0.0
        %423 = vmatmul.mubr.f32.gmra.mxu0 %v319
        %v424 = vpop.f32.mrf.mxu0
        %v425 = vadd.f32 %v286, %v424
        %v426 = vpop.f32.mrf.mxu0
        %v427 = vadd.f32 %v286, %v426
        %428 = vmatprep.mubr.f32.mxu0 0.0
        %429 = vmatmul.mubr.f32.gmra.mxu0 %v322
        %v430 = vpop.f32.mrf.mxu0
        %v431 = vadd.f32 %v291, %v430
        %v432 = vpop.f32.mrf.mxu0
        %v433 = vadd.f32 %v291, %v432
        %434 = vmatprep.mubr.f32.mxu0 0.0
        %435 = vmatmul.mubr.f32.gmra.mxu0 %v325
        %v436 = vpop.f32.mrf.mxu0
        %v437 = vadd.f32 %v296, %v436
        %v438 = vpop.f32.mrf.mxu0
        %v439 = vadd.f32 %v296, %v438
        %440 = vmatprep.mubr.f32.mxu0 0.0
        %441 = vmatmul.mubr.f32.gmra.mxu0 %v328
        %v442 = vpop.f32.mrf.mxu0
        %v443 = vadd.f32 %v301, %v442
        %v444 = vpop.f32.mrf.mxu0
        %v445 = vadd.f32 %v301, %v444
        %446 = vmatprep.mubr.f32.mxu0 0.0
        %447 = vmatmul.mubr.f32.gmra.mxu0 %v331
        %v448 = vpop.f32.mrf.mxu0
        %v449 = vadd.f32 %v306, %v448
        %v450 = vpop.f32.mrf.mxu0
        %v451 = vadd.f32 %v306, %v450
        %452 = vdwg.mxu0
        %v453 = vmax.f32 %v407, 0.0
        %v454 = vmax.f32 %v409, 0.0
        %v455 = vmax.f32 %v413, 0.0
        %v456 = vmax.f32 %v415, 0.0
        %v457 = vmax.f32 %v419, 0.0
        %v458 = vmax.f32 %v421, 0.0
        %v459 = vmax.f32 %v425, 0.0
        %v460 = vmax.f32 %v427, 0.0
        %v461 = vmax.f32 %v431, 0.0
        %v462 = vmax.f32 %v433, 0.0
        %v463 = vmax.f32 %v437, 0.0
        %v464 = vmax.f32 %v439, 0.0
        %v465 = vmax.f32 %v443, 0.0
        %v466 = vmax.f32 %v445, 0.0
        %v467 = vmax.f32 %v449, 0.0
        %v468 = vmax.f32 %v451, 0.0
        %v469 = vld [vmem:[%s3] sm:$0x1]
        %s470 = sld [smem:[#allocation2]]
        %v471 = vstv %s470
        %vm472 = vcmask 490496
        %v474 = vsel %vm472, %v469, 0
        %v477 = vsel %vm333, %v467, 0
        %v480 = vsel %vm333, %v468, 0
        %482 = vmatprep.subr.mxu0 0.0
        %483 = vmatpush1.msra.mxu0 0.0
        %484 = vmatprep.subr.mxu0 0.0
        %485 = vmatpush1.msra.mxu0 0.0
        %486 = vmatprep.subr.mxu0 0.0
        %487 = vmatpush1.msra.mxu0 0.0
        %488 = vmatprep.subr.mxu0 0.0
        %489 = vmatpush1.msra.mxu0 0.0
        %490 = vmatprep.subr.mxu0 0.0
        %491 = vmatpush1.msra.mxu0 0.0
        %492 = vmatprep.subr.mxu0 0.0
        %493 = vmatpush1.msra.mxu0 0.0
        %494 = vmatprep.subr.mxu0 0.0
        %495 = vmatpush1.msra.mxu0 0.0
        %496 = vmatprep.subr.mxu0 0.0
        %497 = vmatpush1.msra.mxu0 0.0
        %498 = vmatprep.subr.mxu0 %v480
        %499 = vmatpush1.msra.mxu0 %v477
        %500 = vmatprep.subr.mxu0 %v466
        %501 = vmatpush1.msra.mxu0 %v465
        %502 = vmatprep.subr.mxu0 %v464
        %503 = vmatpush1.msra.mxu0 %v463
        %504 = vmatprep.subr.mxu0 %v462
        %505 = vmatpush1.msra.mxu0 %v461
        %506 = vmatprep.subr.mxu0 %v460
        %507 = vmatpush1.msra.mxu0 %v459
        %508 = vmatprep.subr.mxu0 %v458
        %509 = vmatpush1.msra.mxu0 %v457
        %510 = vmatprep.subr.mxu0 %v456
        %511 = vmatpush1.msra.mxu0 %v455
        %512 = vmatprep.subr.mxu0 %v454
        %513 = vmatpush1.msra.mxu0 %v453
        %514 = vmatprep.subr.mxu0 0.0
        %515 = vmatpush2.msra.mxu0 0.0
        %516 = vmatprep.subr.mxu0 0.0
        %517 = vmatpush2.msra.mxu0 0.0
        %518 = vmatprep.subr.mxu0 0.0
        %519 = vmatpush2.msra.mxu0 0.0
        %520 = vmatprep.subr.mxu0 0.0
        %521 = vmatpush2.msra.mxu0 0.0
        %522 = vmatprep.subr.mxu0 0.0
        %523 = vmatpush2.msra.mxu0 0.0
        %524 = vmatprep.subr.mxu0 0.0
        %525 = vmatpush2.msra.mxu0 0.0
        %526 = vmatprep.subr.mxu0 0.0
        %527 = vmatpush2.msra.mxu0 0.0
        %528 = vmatprep.subr.mxu0 0.0
        %529 = vmatpush2.msra.mxu0 0.0
        %530 = vmatprep.subr.mxu0 0.0
        %531 = vmatpush2.msra.mxu0 0.0
        %532 = vmatprep.subr.mxu0 0.0
        %533 = vmatpush2.msra.mxu0 0.0
        %534 = vmatprep.subr.mxu0 0.0
        %535 = vmatpush2.msra.mxu0 0.0
        %536 = vmatprep.subr.mxu0 0.0
        %537 = vmatpush2.msra.mxu0 0.0
        %538 = vmatprep.subr.mxu0 0.0
        %539 = vmatpush2.msra.mxu0 0.0
        %540 = vmatprep.subr.mxu0 0.0
        %541 = vmatpush2.msra.mxu0 0.0
        %542 = vmatprep.subr.mxu0 0.0
        %543 = vmatpush2.msra.mxu0 0.0
        %544 = vmatprep.subr.mxu0 0.0
        %545 = vmatpush2.msra.mxu0 0.0
        %546 = vmatprep.mubr.f32.mxu0 0.0
        %547 = vmatmul.mubr.f32.gmra.mxu0 %v474
        %v548 = vpop.f32.mrf.mxu0
        %v549 = vadd.f32 %v471, %v548
        %v550 = vpop.f32.mrf.mxu0
        %v551 = vadd.f32 %v471, %v550
        %552 = vdwg.mxu0
        %v553 = vxor.u32 %v549, 2147483648
        %v554 = vxor.u32 %v551, 2147483648
        %v555 = vmul.f32 %v553, 1.442695
        %v556 = vpow.pop %v555
        %v557 = vmul.f32 %v554, 1.442695
        %v558 = vpow.pop %v557
        %v559 = vadd.f32 %v556, 1.0
        %v560 = vadd.f32 %v558, 1.0
        %v561 = vrcp.pop %v559
        %v562 = vmul.f32 1.0, %v561
        %v563 = vrcp.pop %v560
        %v564 = vmul.f32 1.0, %v563
        %v567 = vcombine.low %v562, %v564
        %v569 = vunpack.c.l.s4 1966171168
        %v570 = vunpack.c.0.s8 %v569
        %v571 = vlaneseq
        %v572 = vshrl.u32 %v571, 7
        %v573 = vsub.s32 %v570, %v572
        %v574 = vrot.slane %v567, %v573
        %v576 = vunpack.c.l.s4 1966171168
        %v577 = vunpack.c.0.s8 %v576
        %v578 = vlaneseq
        %v579 = vshrl.u32 %v578, 7
        %v580 = vsub.s32 %v577, %v579
        %v581 = vrot.slane %v574, %v580
        %v583 = vlaneseq
        %vm584 = vcmp.ge.s32.totalorder %v583, 0
        %vm585 = vcmp.lt.s32.totalorder %v583, 256
        %vm586 = vmand %vm584, %vm585
        %587 = vst.msk [vmem:[%s243] sm:$0x3] %vm586, %v581
        %s588 = sand.u32 %s141, 1
        %s589 = scalar_lea.sflag [#allocation5], %s588
        %s590 = sand.u32 %s141, 1
        %s591 = smul.addr %s590, 2
        %s592 = scalar_lea.vmem [#allocation6], %s591
        // Predicated region
        $region45: #{tpu_custom_call.1} parent=39 // pred_check
          %p593 = pneg %p151
        $region46: #{tpu_custom_call.1} parent=39 // pred_check_branch
          %595 = sbr.rel (%p593) target = $region48
        $region47: #{tpu_custom_call.1} parent=39 // pred_region
          %s596 = smul.u32 2, %s23
          %s598 = ssub.s32 32, 32
          %599 = vsyncadd %s589, %s598
          %s600 = smul.addr %s596, 16
          %s601 = scalar_lea.hbm %s5, %s600
          %s603 = sshll.u32 %s592, 4
          %s604 = int_to_ptr.vmem [resolvable:$true] %s603
          %606 = dma.vmem_to_hbm [thread:$0]  %s604, 32, %s601, %s589
        $region48: #{tpu_custom_call.1} parent=39 // pred_fallthru
          _
      $region40: #{tpu_custom_call.1} parent=5 // pred_fallthru
        _
      %p607 = scmp.le.s32.totalorder 2, %s18
      // Predicated region
      $region49: #{tpu_custom_call.1} parent=5 // pred_check
        %p608 = pneg %p607
      $region50: #{tpu_custom_call.1} parent=5 // pred_check_branch
        %610 = sbr.rel (%p608) target = $region52
      $region51: #{tpu_custom_call.1} parent=5 // pred_region
        %s611 = ssub.s32 %s18, 2
        // Predicated region
        $region53: #{tpu_custom_call.1} parent=51 // pred_check
          %p612 = pneg %p157
        $region54: #{tpu_custom_call.1} parent=51 // pred_check_branch
          %614 = sbr.rel (%p612) target = $region56
        $region55: #{tpu_custom_call.1} parent=51 // pred_region
          %s615 = sand.u32 %s142, 1
          %s616 = scalar_lea.sflag [#allocation5], %s615
          %s617 = sand.u32 %s142, 1
          %s618 = smul.addr %s617, 2
          %s619 = scalar_lea.vmem [#allocation6], %s618
          %620 = dma.done %s616, 32
        $region56: #{tpu_custom_call.1} parent=51 // pred_fallthru
          _
      $region52: #{tpu_custom_call.1} parent=5 // pred_fallthru
        _
    $region6: #{tpu_custom_call.1} parent=1 // loop_footer
      %s22 = sadd.s32 1, %s18
    $region7: #{tpu_custom_call.1} parent=1 // loop_footer_branch
      %17 = sbr.rel target = $region3
    $region8: #{tpu_custom_call.1} parent=1 // loop_exit
      _
    %621 = vsyncpa [#allocation4], 1
    %s622 = scalar_lea.sflag [#allocation4], 1
    %623 = vsyncpa %s622, 1
    %624 = vsyncpa [#allocation5], 1
    %s625 = scalar_lea.sflag [#allocation5], 1
    %626 = vsyncpa %s625, 1

</llo_original>
